<compile_context>
chip_gen: v7x
topology: tpu7x:2x2x1
jax: 0.10.0
libtpu: 0.0.40
codegen_flags: <defaults>
</compile_context>

<pallas_src>
import jax
import jax.numpy as jnp
from jax import lax
from jax.experimental import pallas as pl
from jax.experimental.pallas import tpu as pltpu


def _round_up(x, m):
    return (x + m - 1) // m * m


def _gfss_head_kernel(q_ref, m_ref, b_ref, out_ref):
    """One (batch, spatial-tile) step of the fused forward_all head.

    q_ref   : (1, C, TN)   feature tile (flattened spatial positions on lanes)
    m_ref   : (Kp, C)      fused effective classifier (row 0 = bg, rows 1..K = fg,
                           padded with zero rows up to a multiple of 8 sublanes)
    b_ref   : (1,) SMEM    classifier bias (scalar)
    out_ref : (1, Kp, TN)  output logits tile
    """
    acc = jnp.dot(m_ref[...], q_ref[0], preferred_element_type=jnp.float32)
    out_ref[0] = acc + b_ref[0]


def gfss_forward_all(features, base_emb, cls_w, cls_b, *, tile_n=512):
    """features: [B, C, H, W] (NCHW), base_emb: [K, C], cls_w: [C], cls_b: [].

    Feature dtype is preserved (pass bf16 features on v5e/v6e/v7x to halve HBM
    bytes; MXU accumulation is f32 either way). Output logits are f32.
    """
    B, C, H, W = features.shape
    N = H * W
    K = base_emb.shape[0]
    n_out = 1 + K

    # ---- tiny wrapper-side precompute ([K,C]-sized, negligible) ----
    # F.normalize(bases_b, p=2, dim=-1) with PyTorch eps semantics.
    be = base_emb.astype(jnp.float32)
    norm = jnp.sqrt(jnp.sum(be * be, axis=-1, keepdims=True))
    s1 = be / jnp.maximum(norm, 1e-12)                        # [K, C]
    w = cls_w.reshape(1, C).astype(jnp.float32)               # [1, C]
    hp = lax.Precision.HIGHEST
    sw = jnp.dot(s1, w.T, precision=hp)                       # [K, 1]
    m_bg = w - jnp.dot(sw.T, s1, precision=hp)                # [1, C]
    m_fg = sw * s1                                            # [K, C]
    M = jnp.concatenate([m_bg, m_fg], axis=0)                 # [1+K, C]

    # Pad output-channel dim to a multiple of 8 sublanes -> full-width stores.
    Kp = _round_up(n_out, 8)
    if Kp != n_out:
        M = jnp.pad(M, ((0, Kp - n_out), (0, 0)))

    q = features.reshape(B, C, N)          # keep input dtype (no f32 upcast pass)
    M = M.astype(q.dtype)

    # Large lane-dense spatial tiles; pad N if it isn't tile-aligned (columns are
    # independent, so zero-padding is exact for the valid columns).
    tile = min(_round_up(tile_n, 128), _round_up(N, 128))
    N_pad = _round_up(N, tile)
    if N_pad != N:
        q = jnp.pad(q, ((0, 0), (0, 0), (0, N_pad - N)))

    bias = cls_b.reshape(1).astype(jnp.float32)               # SMEM scalar

    out = pl.pallas_call(
        _gfss_head_kernel,
        out_shape=jax.ShapeDtypeStruct((B, Kp, N_pad), jnp.float32),
        grid=(B, N_pad // tile),
        in_specs=[
            pl.BlockSpec((1, C, tile), lambda bi, ni: (bi, 0, ni)),
            pl.BlockSpec((Kp, C), lambda bi, ni: (0, 0)),
            pl.BlockSpec(memory_space=pltpu.MemorySpace.SMEM),
        ],
        out_specs=pl.BlockSpec((1, Kp, tile), lambda bi, ni: (bi, 0, ni)),
        compiler_params=pltpu.CompilerParams(
            dimension_semantics=("parallel", "parallel")),
    )(q, M, bias)

    out = out[:, :n_out, :N]
    return out.reshape(B, n_out, H, W)


def reference_forward_all(features, base_emb, cls_w, cls_b):
    """Pure-JAX mirror of the PyTorch forward_all head (non-fused)."""
    B, C, H, W = features.shape
    K = base_emb.shape[0]
    q = features.reshape(B, C, H * W).astype(jnp.float32)
    be = base_emb.astype(jnp.float32)
    s1 = be / jnp.maximum(jnp.sqrt(jnp.sum(be * be, -1, keepdims=True)), 1e-12)
    hp = lax.Precision.HIGHEST
    proj1 = jnp.einsum('kc,bcn->bkn', s1, q, precision=hp)          # [B,K,N]
    out_fg = proj1[:, :, None, :] * s1[None, :, :, None]            # [B,K,C,N]
    out_bg = q - out_fg.sum(1)                                      # [B,C,N]
    feats = jnp.concatenate([out_bg[:, None], out_fg], axis=1)      # [B,1+K,C,N]
    preds = jnp.einsum('bkcn,c->bkn', feats, cls_w.reshape(C),
                       precision=hp) + cls_b.reshape(())
    return preds.reshape(B, 1 + K, H, W)


if __name__ == "__main__":
    # Small, TPU-tile-friendly shapes consistent with forward_all:
    #   decoder feature map [B, C, h, w], base_emb [K, C], 1x1 classifier C->1.
    B, C, H, W = 2, 32, 16, 16
    n_base, n_novel = 4, 2
    K = n_base + n_novel

    key = jax.random.PRNGKey(0)
    k_feat, k_emb, k_w, k_b = jax.random.split(key, 4)
    features = jax.random.normal(k_feat, (B, C, H, W), dtype=jnp.float32)
    base_emb = jax.random.normal(k_emb, (K, C), dtype=jnp.float32)
    cls_w = jax.random.normal(k_w, (C,), dtype=jnp.float32) * 0.1
    cls_b = jax.random.normal(k_b, (), dtype=jnp.float32) * 0.1

    ref = reference_forward_all(features, base_emb, cls_w, cls_b)

    # f32 path (exact fidelity to the PyTorch .to(torch.float) decompose).
    preds = gfss_forward_all(features, base_emb, cls_w, cls_b, tile_n=512)
    preds = jax.block_until_ready(preds)
    assert preds.shape == (B, 1 + K, H, W)
    assert jnp.allclose(preds, ref, atol=1e-2, rtol=1e-2), (
        float(jnp.max(jnp.abs(preds - ref))))

    # bf16 feature path (recommended on v5e/v6e/v7x: halves HBM bytes for q).
    preds_bf16 = gfss_forward_all(features.astype(jnp.bfloat16), base_emb,
                                  cls_w, cls_b, tile_n=512)
    preds_bf16 = jax.block_until_ready(preds_bf16)
    assert jnp.allclose(preds_bf16, ref, atol=1e-1, rtol=1e-1), (
        float(jnp.max(jnp.abs(preds_bf16 - ref))))

    print("KERNEL_OK")
</pallas_src>

<mosaic_0001>
module attributes {stable_mosaic.version = 11 : i64} {
  func.func @_gfss_head_kernel(%arg0: i32, %arg1: i32, %arg2: memref<1x32x256xf32, #tpu.memory_space<vmem>>, %arg3: memref<8x32xf32, #tpu.memory_space<vmem>>, %arg4: memref<1xf32, #tpu.memory_space<smem>>, %arg5: memref<1x8x256xf32, #tpu.memory_space<vmem>>) attributes {dimension_semantics = [#tpu.dimension_semantics<parallel>, #tpu.dimension_semantics<parallel>], iteration_bounds = array<i64: 2, 1>, scalar_prefetch = 0 : i64, scratch_operands = 0 : i64, tpu.core_type = #tpu.core_type<tc>, window_params = [{transform_indices = @transform_0, window_bounds = array<i64: 1, 32, 256>}, {pipeline_mode = #tpu.pipeline_mode<synchronous>, transform_indices = @transform_1, window_bounds = array<i64: 8, 32>}, {transform_indices = @transform_2, window_bounds = array<i64: 1>}, {transform_indices = @transform_3, window_bounds = array<i64: 1, 8, 256>}]} {
    %c0 = arith.constant 0 : index
    %c0_0 = arith.constant 0 : index
    %0 = vector.load %arg3[%c0, %c0_0] : memref<8x32xf32, #tpu.memory_space<vmem>>, vector<8x32xf32>
    %c0_1 = arith.constant 0 : index
    %c0_2 = arith.constant 0 : index
    %c0_3 = arith.constant 0 : index
    %1 = vector.load %arg2[%c0_1, %c0_2, %c0_3] : memref<1x32x256xf32, #tpu.memory_space<vmem>>, vector<1x32x256xf32>
    %2 = vector.shape_cast %1 : vector<1x32x256xf32> to vector<32x256xf32>
    %cst = arith.constant dense<0.000000e+00> : vector<8x256xf32>
    %3 = tpu.matmul %0, %2, %cst {dimension_numbers = #tpu.dot_dimension_numbers<[1], [0], [0], [1], [0, 0, 1, 1], [], []>} : vector<8x32xf32>, vector<32x256xf32>, vector<8x256xf32> -> vector<8x256xf32>
    %c0_4 = arith.constant 0 : index
    %4 = memref.load %arg4[%c0_4] : memref<1xf32, #tpu.memory_space<smem>>
    %5 = vector.broadcast %4 : f32 to vector<8x256xf32>
    %6 = arith.addf %3, %5 : vector<8x256xf32>
    %c0_5 = arith.constant 0 : index
    %c0_6 = arith.constant 0 : index
    %c0_7 = arith.constant 0 : index
    %7 = vector.load %arg5[%c0_5, %c0_6, %c0_7] : memref<1x8x256xf32, #tpu.memory_space<vmem>>, vector<1x8x256xf32>
    %8 = vector.shape_cast %7 : vector<1x8x256xf32> to vector<8x256xf32>
    %9 = vector.shape_cast %6 : vector<8x256xf32> to vector<1x8x256xf32>
    tpu.vector_store %arg5[%c0_5, %c0_6, %c0_7], %9 {strides = array<i32>} : memref<1x8x256xf32, #tpu.memory_space<vmem>>, vector<1x8x256xf32>,
    return
  }
  func.func @transform_0(%arg0: i32, %arg1: i32) -> (i32, i32, i32) {
    %c0_i32 = arith.constant 0 : i32
    %c0_i32_0 = arith.constant 0 : i32
    return %arg0, %c0_i32, %arg1 : i32, i32, i32
  }
  func.func @transform_1(%arg0: i32, %arg1: i32) -> (i32, i32) {
    %c0_i32 = arith.constant 0 : i32
    %c0_i32_0 = arith.constant 0 : i32
    %c0_i32_1 = arith.constant 0 : i32
    return %c0_i32, %c0_i32_0 : i32, i32
  }
  func.func @transform_2(%arg0: i32, %arg1: i32) -> i32 {
    %c0_i32 = arith.constant 0 : i32
    %c0_i32_0 = arith.constant 0 : i32
    return %c0_i32 : i32
  }
  func.func @transform_3(%arg0: i32, %arg1: i32) -> (i32, i32, i32) {
    %c0_i32 = arith.constant 0 : i32
    %c0_i32_0 = arith.constant 0 : i32
    return %arg0, %c0_i32, %arg1 : i32, i32, i32
  }
}

</mosaic_0001>

<llo_original>
// kernel: tpu_custom_call.1
$region0: #{tpu_custom_call.1}
  #allocation0 [shape = 'u32[]', space=smem, size = 0x4, offset = 0x4, fixed_abs, tag = 'smem constant byte address 0x4 - core index']
  #allocation1 [shape = 'u32[144,128]{1,0:T(1,128)}', space=vmem, size = 0x12000, scoped, tag = 'internal scratch']
  #allocation2 [shape = 'f32[1]{0:T(128)S(6)}', space=smem, size = 0x200, scoped, tag = 'scoped memory for tpu_custom_call.1']
  %s0 = inlined_call_operand.hbm [shape: f32[2,32,256], index: 0, kind: input, shape index: {}]
  %s1 = inlined_call_operand.hbm [shape: f32[8,32], index: 1, kind: input, shape index: {}]
  %s2 = inlined_call_operand.<no memory space> [shape: f32[1], index: 2, kind: input, shape index: {}]
  %s3 = inlined_call_operand.hbm [shape: f32[2,8,256], index: 3, kind: output, shape index: {}]
  %s4 = sld [smem:[#allocation0]]
  $region53: #{tpu_custom_call.1} parent=0
    _
  %s6 = ssub.s32 1, %s4
  %s7 = scalar_select 0, %s6, %s4
  %8 = sst [smem:[#allocation2]] %s2
  $region1: #{tpu_custom_call.1} parent=0
    #allocation3 [shape = 'u8[65536]{0}', space=vmem, size = 0x10000, scoped, tag = 'input window, operand 0']
    #allocation4 [shape = 's32[2]{0}', space=sflag, size = 0x8, scoped, tag = 'scoped memory for tpu_custom_call.1']
    #allocation5 [shape = 's32[2]{0}', space=sflag, size = 0x8, scoped, tag = 'scoped memory for tpu_custom_call.1']
    #allocation6 [shape = 'u8[4096]{0}', space=vmem, size = 0x1000, scoped, tag = 'input window, operand 1, single buffered']
    #allocation7 [shape = 's32[1]{0}', space=sflag, size = 0x4, scoped, tag = 'scoped memory for tpu_custom_call.1']
    #allocation8 [shape = 'u8[16384]{0}', space=vmem, size = 0x4000, scoped, tag = 'output window, operand 0']
    %9 = vsyncpa [#allocation4], 0
    %s10 = scalar_lea.sflag [#allocation4], 1
    %11 = vsyncpa %s10, 0
    %12 = vsyncpa [#allocation7], 0
    %13 = vsyncpa [#allocation5], 0
    %s14 = scalar_lea.sflag [#allocation5], 1
    %15 = vsyncpa %s14, 0
    loop: start=0, step=1, limit=4
    $region2: #{tpu_custom_call.1} parent=1 // loop_pre_header
      _
    $region3: #{tpu_custom_call.1} parent=1 // loop_header
      %s17 = sphi 0, %s21
      %p18 = scmp.ge.s32.totalorder %s17, 4
      %s24 = sphi 0, %s36
      %s25 = sphi 0, %s32
      %s26 = sphi 0, %s24
      %s27 = sphi 0, %s25
      %s28 = sphi 0, %s26
      %s29 = sphi 0, %s27
      %s41 = sphi 0, %s43
      %s44 = sphi 0, %s41
      %s45 = sphi 0, %s44
      %s61 = sphi 0, %s45
      %s65 = sphi 0, %s65
      %s67 = sphi 0, %s65
      %s68 = sphi 0, %s67
      %s82 = sphi 0, %s68
      %s86 = sphi 0, %s86
      %s88 = sphi 0, %s86
      %s89 = sphi 0, %s88
      %s103 = sphi 0, %s89
      %s111 = sphi 0, %s113
      %s114 = sphi 0, %s111
      %s115 = sphi 0, %s114
      %s131 = sphi 0, %s115
    $region4: #{tpu_custom_call.1} parent=1 // loop_header_branch
      %20 = sbr.rel (%p18) target = $region8
    $region5: #{tpu_custom_call.1} parent=1 // loop_body
      %s22 = ssub.s32 %s17, 1
      %s23 = ssub.s32 %s17, 2
      %s30 = sadd.s32 1, %s25
      %p31 = scmp.ge.s32.totalorder %s30, 1
      %s32 = scalar_select %p31, 0, %s30
      %s33 = sadd.s32 1, %s24
      %s34 = scalar_select %p31, %s33, %s24
      %p35 = scmp.ge.s32.totalorder %s34, 2
      %s36 = scalar_select %p35, 0, %s34
      %s37 = ssub.s32 %s24, %s36
      %s38 = ssub.s32 %s25, %s32
      %s39 = sor.u32 %s37, %s38
      %p40 = scmp.eq.s32.totalorder %s39, 0
      %s42 = sadd.s32 %s41, 1
      %s43 = scalar_select %p40, %s41, %s42
      %p46 = pneg %p40
      %p47 = scmp.eq.s32.totalorder %s17, 1
      %p48 = por %p46, %p47
      %p49 = scmp.ne.s32.totalorder %s41, %s44
      %p50 = scmp.eq.s32.totalorder %s17, 0
      %p51 = por %p49, %p50
      %p52 = scmp.ne.s32.totalorder %s41, %s44
      %p53 = scmp.eq.s32.totalorder %s22, 1
      %p54 = por %p52, %p53
      %p55 = scmp.ne.s32.totalorder %s44, %s45
      %p56 = scmp.eq.s32.totalorder %s22, 0
      %p57 = por %p55, %p56
      %p58 = scmp.ne.s32.totalorder %s44, %s45
      %p59 = scmp.eq.s32.totalorder %s23, 1
      %p60 = por %p58, %p59
      %p62 = scmp.ne.s32.totalorder %s45, %s61
      %p63 = scmp.eq.s32.totalorder %s23, 0
      %p64 = por %p62, %p63
      %s66 = sadd.s32 %s65, 1
      %p69 = scmp.eq.s32.totalorder %s17, 1
      %p70 = scmp.ne.s32.totalorder %s65, %s67
      %p71 = scmp.eq.s32.totalorder %s17, 0
      %p72 = por %p70, %p71
      %p73 = scmp.ne.s32.totalorder %s65, %s67
      %p74 = scmp.eq.s32.totalorder %s22, 1
      %p75 = por %p73, %p74
      %p76 = scmp.ne.s32.totalorder %s67, %s68
      %p77 = scmp.eq.s32.totalorder %s22, 0
      %p78 = por %p76, %p77
      %p79 = scmp.ne.s32.totalorder %s67, %s68
      %p80 = scmp.eq.s32.totalorder %s23, 1
      %p81 = por %p79, %p80
      %p83 = scmp.ne.s32.totalorder %s68, %s82
      %p84 = scmp.eq.s32.totalorder %s23, 0
      %p85 = por %p83, %p84
      %s87 = sadd.s32 %s86, 1
      %p90 = scmp.eq.s32.totalorder %s17, 1
      %p91 = scmp.ne.s32.totalorder %s86, %s88
      %p92 = scmp.eq.s32.totalorder %s17, 0
      %p93 = por %p91, %p92
      %p94 = scmp.ne.s32.totalorder %s86, %s88
      %p95 = scmp.eq.s32.totalorder %s22, 1
      %p96 = por %p94, %p95
      %p97 = scmp.ne.s32.totalorder %s88, %s89
      %p98 = scmp.eq.s32.totalorder %s22, 0
      %p99 = por %p97, %p98
      %p100 = scmp.ne.s32.totalorder %s88, %s89
      %p101 = scmp.eq.s32.totalorder %s23, 1
      %p102 = por %p100, %p101
      %p104 = scmp.ne.s32.totalorder %s89, %s103
      %p105 = scmp.eq.s32.totalorder %s23, 0
      %p106 = por %p104, %p105
      %s107 = ssub.s32 %s24, %s36
      %s108 = ssub.s32 %s25, %s32
      %s109 = sor.u32 %s107, %s108
      %p110 = scmp.eq.s32.totalorder %s109, 0
      %s112 = sadd.s32 %s111, 1
      %s113 = scalar_select %p110, %s111, %s112
      %p116 = pneg %p110
      %p117 = scmp.eq.s32.totalorder %s17, 1
      %p118 = por %p116, %p117
      %p119 = scmp.ne.s32.totalorder %s111, %s114
      %p120 = scmp.eq.s32.totalorder %s17, 0
      %p121 = por %p119, %p120
      %p122 = scmp.ne.s32.totalorder %s111, %s114
      %p123 = scmp.eq.s32.totalorder %s22, 1
      %p124 = por %p122, %p123
      %p125 = scmp.ne.s32.totalorder %s114, %s115
      %p126 = scmp.eq.s32.totalorder %s22, 0
      %p127 = por %p125, %p126
      %p128 = scmp.ne.s32.totalorder %s114, %s115
      %p129 = scmp.eq.s32.totalorder %s23, 1
      %p130 = por %p128, %p129
      %p132 = scmp.ne.s32.totalorder %s115, %s131
      %p133 = scmp.eq.s32.totalorder %s23, 0
      %p134 = por %p132, %p133
      %p135 = scmp.le.s32.totalorder 1, %s17
      %p136 = scmp.lt.s32.totalorder %s17, 3
      %p137 = pnand %p135, %p136
      %p138 = pneg %p137
      // Predicated region
      $region9: #{tpu_custom_call.1} parent=5 // pred_check
        _
      $region10: #{tpu_custom_call.1} parent=5 // pred_check_branch
        %140 = sbr.rel (%p137) target = $region12
      $region11: #{tpu_custom_call.1} parent=5 // pred_region
        %s141 = ssub.s32 %s17, 1
        // Predicated region
        $region13: #{tpu_custom_call.1} parent=11 // pred_check
          %p142 = pneg %p78
        $region14: #{tpu_custom_call.1} parent=11 // pred_check_branch
          %144 = sbr.rel (%p142) target = $region16
        $region15: #{tpu_custom_call.1} parent=11 // pred_region
          %s146 = ssub.s32 128, 128
          %147 = vsyncadd [#allocation7], %s146
          %s149 = sshll.u32 [#allocation6], 4
          %s150 = int_to_ptr.vmem [resolvable:$true] %s149
          %152 = dma.hbm_to_vmem [thread:$0]  %s1, 128, %s150, [#allocation7]
        $region16: #{tpu_custom_call.1} parent=11 // pred_fallthru
          _
        // Predicated region
        $region17: #{tpu_custom_call.1} parent=11 // pred_check
          %p153 = pneg %p99
        $region18: #{tpu_custom_call.1} parent=11 // pred_check_branch
          %155 = sbr.rel (%p153) target = $region20
        $region19: #{tpu_custom_call.1} parent=11 // pred_region
          _
        $region20: #{tpu_custom_call.1} parent=11 // pred_fallthru
          _
      $region12: #{tpu_custom_call.1} parent=5 // pred_fallthru
        _
      %p156 = scmp.lt.s32.totalorder %s17, 2
      // Predicated region
      $region21: #{tpu_custom_call.1} parent=5 // pred_check
        %p157 = pneg %p156
      $region22: #{tpu_custom_call.1} parent=5 // pred_check_branch
        %159 = sbr.rel (%p157) target = $region24
      $region23: #{tpu_custom_call.1} parent=5 // pred_region
        // Predicated region
        $region25: #{tpu_custom_call.1} parent=23 // pred_check
          %p160 = pneg %p51
        $region26: #{tpu_custom_call.1} parent=23 // pred_check_branch
          %162 = sbr.rel (%p160) target = $region28
        $region27: #{tpu_custom_call.1} parent=23 // pred_region
          %s163 = sand.u32 %s41, 1
          %s164 = scalar_lea.sflag [#allocation4], %s163
          %s165 = sand.u32 %s41, 1
          %s166 = smul.addr %s165, 64
          %s167 = scalar_lea.vmem [#allocation3], %s166
          %s168 = smul.u32 2, %s25
          %s170 = ssub.s32 1024, 1024
          %171 = vsyncadd %s164, %s170
          %s172 = smul.addr %s24, 8
          %s173 = sadd.s32 %s168, %s172
          %s174 = smul.addr %s173, 128
          %s175 = scalar_lea.hbm %s0, %s174
          %s176 = sshll.u32 %s167, 4
          %s177 = int_to_ptr.vmem [resolvable:$true] %s176
          %182 = dma.hbm_to_vmem [thread:$0]  %s175, 1024, %s177, %s164, 256, 256, 16
        $region28: #{tpu_custom_call.1} parent=23 // pred_fallthru
          _
      $region24: #{tpu_custom_call.1} parent=5 // pred_fallthru
        _
      %p183 = scmp.le.s32.totalorder 1, %s17
      %p184 = scmp.lt.s32.totalorder %s17, 3
      %p185 = pnand %p183, %p184
      %p186 = pneg %p185
      // Predicated region
      $region29: #{tpu_custom_call.1} parent=5 // pred_check
        _
      $region30: #{tpu_custom_call.1} parent=5 // pred_check_branch
        %188 = sbr.rel (%p185) target = $region32
      $region31: #{tpu_custom_call.1} parent=5 // pred_region
        %s189 = ssub.s32 %s17, 1
        %s190 = sand.u32 %s44, 1
        %s191 = scalar_lea.sflag [#allocation4], %s190
        %s192 = sand.u32 %s44, 1
        %s193 = smul.addr %s192, 64
        %s194 = scalar_lea.vmem [#allocation3], %s193
        // Predicated region
        $region33: #{tpu_custom_call.1} parent=31 // pred_check
          %p195 = pneg %p57
        $region34: #{tpu_custom_call.1} parent=31 // pred_check_branch
          %197 = sbr.rel (%p195) target = $region36
        $region35: #{tpu_custom_call.1} parent=31 // pred_region
          %198 = dma.done %s191, 1024
        $region36: #{tpu_custom_call.1} parent=31 // pred_fallthru
          _
        // Predicated region
        $region37: #{tpu_custom_call.1} parent=31 // pred_check
          %p199 = pneg %p78
        $region38: #{tpu_custom_call.1} parent=31 // pred_check_branch
          %201 = sbr.rel (%p199) target = $region40
        $region39: #{tpu_custom_call.1} parent=31 // pred_region
          %202 = dma.done [#allocation7], 128
        $region40: #{tpu_custom_call.1} parent=31 // pred_fallthru
          _
        %s203 = sand.u32 %s44, 1
        %s204 = scalar_lea.sflag [#allocation4], %s203
        %s205 = sand.u32 %s44, 1
        %s206 = smul.addr %s205, 64
        %s207 = scalar_lea.vmem [#allocation3], %s206
        %p208 = pneg %p57
        %p209 = pneg %p54
        %p210 = pneg %p78
        %p211 = pneg %p75
        %p212 = pneg %p99
        %p213 = pneg %p96
        %p214 = pneg %p127
        %p215 = pneg %p124
        %s216 = sand.u32 %s114, 1
        %s217 = scalar_lea.sflag [#allocation5], %s216
        %s218 = sand.u32 %s114, 1
        %s219 = smul.addr %s218, 16
        %s220 = scalar_lea.vmem [#allocation8], %s219
        %s221 = smul.u32 2, %s27
        %s222 = smul.u32 2, %s27
        %v223 = vld [vmem:[#allocation6] sm:$0xff]
        %v224 = vld [vmem:[%s194] sm:$0xff]
        %v225 = vld [vmem:[%s194 + $0x8] sm:$0xff]
        %v226 = vld [vmem:[%s194 + $0x10] sm:$0xff]
        %v227 = vld [vmem:[%s194 + $0x18] sm:$0xff]
        %v228 = vld [vmem:[%s194 + $0x20] sm:$0xff]
        %v229 = vld [vmem:[%s194 + $0x28] sm:$0xff]
        %v230 = vld [vmem:[%s194 + $0x30] sm:$0xff]
        %v231 = vld [vmem:[%s194 + $0x38] sm:$0xff]
        %s232 = sld [smem:[#allocation2]]
        %v233 = vstv %s232
        %vm234 = vcmask 261120
        %v236 = vsel %vm234, %v223, 0
        %238 = vmatprep.subr.mxu0 %v225
        %239 = vmatpush1.msra.mxu0 %v224
        %240 = vmatprep.subr.mxu0 %v227
        %241 = vmatpush1.msra.mxu0 %v226
        %242 = vmatprep.subr.mxu0 %v229
        %243 = vmatpush1.msra.mxu0 %v228
        %244 = vmatprep.subr.mxu0 %v231
        %245 = vmatpush1.msra.mxu0 %v230
        %246 = vmatprep.subr.mxu0 0.0
        %247 = vmatpush1.msra.mxu0 0.0
        %248 = vmatprep.subr.mxu0 0.0
        %249 = vmatpush1.msra.mxu0 0.0
        %250 = vmatprep.subr.mxu0 0.0
        %251 = vmatpush1.msra.mxu0 0.0
        %252 = vmatprep.subr.mxu0 0.0
        %253 = vmatpush1.msra.mxu0 0.0
        %254 = vmatprep.subr.mxu0 0.0
        %255 = vmatpush1.msra.mxu0 0.0
        %256 = vmatprep.subr.mxu0 0.0
        %257 = vmatpush1.msra.mxu0 0.0
        %258 = vmatprep.subr.mxu0 0.0
        %259 = vmatpush1.msra.mxu0 0.0
        %260 = vmatprep.subr.mxu0 0.0
        %261 = vmatpush1.msra.mxu0 0.0
        %262 = vmatprep.subr.mxu0 0.0
        %263 = vmatpush1.msra.mxu0 0.0
        %264 = vmatprep.subr.mxu0 0.0
        %265 = vmatpush1.msra.mxu0 0.0
        %266 = vmatprep.subr.mxu0 0.0
        %267 = vmatpush1.msra.mxu0 0.0
        %268 = vmatprep.subr.mxu0 0.0
        %269 = vmatpush1.msra.mxu0 0.0
        %270 = vmatprep.subr.mxu0 0.0
        %271 = vmatpush1.msra.mxu0 0.0
        %272 = vmatprep.subr.mxu0 0.0
        %273 = vmatpush1.msra.mxu0 0.0
        %274 = vmatprep.subr.mxu0 0.0
        %275 = vmatpush1.msra.mxu0 0.0
        %276 = vmatprep.subr.mxu0 0.0
        %277 = vmatpush1.msra.mxu0 0.0
        %278 = vmatprep.subr.mxu0 0.0
        %279 = vmatpush1.msra.mxu0 0.0
        %280 = vmatprep.subr.mxu0 0.0
        %281 = vmatpush1.msra.mxu0 0.0
        %282 = vmatprep.subr.mxu0 0.0
        %283 = vmatpush1.msra.mxu0 0.0
        %284 = vmatprep.subr.mxu0 0.0
        %285 = vmatpush1.msra.mxu0 0.0
        %286 = vmatprep.subr.mxu0 0.0
        %287 = vmatpush1.msra.mxu0 0.0
        %288 = vmatprep.subr.mxu0 0.0
        %289 = vmatpush1.msra.mxu0 0.0
        %290 = vmatprep.subr.mxu0 0.0
        %291 = vmatpush1.msra.mxu0 0.0
        %292 = vmatprep.subr.mxu0 0.0
        %293 = vmatpush1.msra.mxu0 0.0
        %294 = vmatprep.subr.mxu0 0.0
        %295 = vmatpush1.msra.mxu0 0.0
        %296 = vmatprep.subr.mxu0 0.0
        %297 = vmatpush1.msra.mxu0 0.0
        %298 = vmatprep.subr.mxu0 0.0
        %299 = vmatpush1.msra.mxu0 0.0
        %300 = vmatprep.subr.mxu0 0.0
        %301 = vmatpush1.msra.mxu0 0.0
        %302 = vmatprep.mubr.f32.mxu0 0.0
        %303 = vmatmul.mubr.f32.gmra.mrb[0].mxu0 %v236
        %v304 = vpop.f32.mrb[0].mxu0
        %v305 = vadd.f32 %v233, %v304
        %v306 = vpop.f32.mrb[0].mxu0
        %v307 = vadd.f32 %v233, %v306
        %308 = vdwg.mxu0
        %309 = vst [vmem:[%s220] sm:$0xff] %v305
        %310 = vst [vmem:[%s220 + $0x8] sm:$0xff] %v307
        %s311 = sand.u32 %s114, 1
        %s312 = scalar_lea.sflag [#allocation5], %s311
        %s313 = sand.u32 %s114, 1
        %s314 = smul.addr %s313, 16
        %s315 = scalar_lea.vmem [#allocation8], %s314
        // Predicated region
        $region41: #{tpu_custom_call.1} parent=31 // pred_check
          %p316 = pneg %p124
        $region42: #{tpu_custom_call.1} parent=31 // pred_check_branch
          %318 = sbr.rel (%p316) target = $region44
        $region43: #{tpu_custom_call.1} parent=31 // pred_region
          %s319 = smul.u32 2, %s27
          %s321 = ssub.s32 256, 256
          %322 = vsyncadd %s312, %s321
          %s323 = smul.addr %s26, 2
          %s324 = sadd.s32 %s319, %s323
          %s325 = smul.addr %s324, 128
          %s326 = scalar_lea.hbm %s3, %s325
          %s328 = sshll.u32 %s315, 4
          %s329 = int_to_ptr.vmem [resolvable:$true] %s328
          %331 = dma.vmem_to_hbm [thread:$0]  %s329, 256, %s326, %s312
        $region44: #{tpu_custom_call.1} parent=31 // pred_fallthru
          _
      $region32: #{tpu_custom_call.1} parent=5 // pred_fallthru
        _
      %p332 = scmp.le.s32.totalorder 2, %s17
      // Predicated region
      $region45: #{tpu_custom_call.1} parent=5 // pred_check
        %p333 = pneg %p332
      $region46: #{tpu_custom_call.1} parent=5 // pred_check_branch
        %335 = sbr.rel (%p333) target = $region48
      $region47: #{tpu_custom_call.1} parent=5 // pred_region
        %s336 = ssub.s32 %s17, 2
        // Predicated region
        $region49: #{tpu_custom_call.1} parent=47 // pred_check
          %p337 = pneg %p130
        $region50: #{tpu_custom_call.1} parent=47 // pred_check_branch
          %339 = sbr.rel (%p337) target = $region52
        $region51: #{tpu_custom_call.1} parent=47 // pred_region
          %s340 = sand.u32 %s115, 1
          %s341 = scalar_lea.sflag [#allocation5], %s340
          %s342 = sand.u32 %s115, 1
          %s343 = smul.addr %s342, 16
          %s344 = scalar_lea.vmem [#allocation8], %s343
          %345 = dma.done %s341, 256
        $region52: #{tpu_custom_call.1} parent=47 // pred_fallthru
          _
      $region48: #{tpu_custom_call.1} parent=5 // pred_fallthru
        _
    $region6: #{tpu_custom_call.1} parent=1 // loop_footer
      %s21 = sadd.s32 1, %s17
    $region7: #{tpu_custom_call.1} parent=1 // loop_footer_branch
      %16 = sbr.rel target = $region3
    $region8: #{tpu_custom_call.1} parent=1 // loop_exit
      _
    %346 = vsyncpa [#allocation4], 1
    %s347 = scalar_lea.sflag [#allocation4], 1
    %348 = vsyncpa %s347, 1
    %349 = vsyncpa [#allocation7], 1
    %350 = vsyncpa [#allocation5], 1
    %s351 = scalar_lea.sflag [#allocation5], 1
    %352 = vsyncpa %s351, 1

</llo_original>
